<compile_context>
chip_gen: v6e
topology: v6e:2x2x1
jax: 0.10.0
libtpu: 0.0.40
codegen_flags: <defaults>
</compile_context>

<pallas_src>
import functools

import jax
import jax.numpy as jnp
import numpy as np
from jax.experimental import pallas as pl
from jax.experimental.pallas import tpu as pltpu

EPS = 1e-5


# ----------------------------- Pallas kernel ------------------------------- #

def _bn_relu_t(x, g, b):
    """BatchNorm1d + ReLU in transposed token layout.

    x: (C, N) -- per-row (channel) statistics over the N tokens, single-pass
    variance  E[x^2] - mean^2  (biased, training-mode).  g, b: (C, 1).
    """
    inv_n = 1.0 / x.shape[1]
    mean = jnp.sum(x, axis=1, keepdims=True) * inv_n
    var = jnp.sum(x * x, axis=1, keepdims=True) * inv_n - mean * mean
    y = (x - mean) * jax.lax.rsqrt(var + EPS) * g + b
    return jnp.maximum(y, 0.0)


def _gen_kernel(x_ref, g0_ref, be0_ref,
                win_ref, gin_ref, bein_ref,
                wout_ref, gout_ref, beout_ref,
                wc_ref, bc_ref,
                y_ref, *, nc):
    # x: (Cin, N) transposed token layout (already projected).
    x = _bn_relu_t(x_ref[...], g0_ref[...], be0_ref[...])

    # Three input paths fused into one matmul: (3*NC, Cin) @ (Cin, N).
    h = jnp.dot(win_ref[...], x, preferred_element_type=jnp.float32)
    h = _bn_relu_t(h, gin_ref[...], bein_ref[...])

    # Mixing: a_m = a/2 + (b+c)/4 = (a + s)/4 with s = a + b + c.
    s = h[0:nc] + h[nc:2 * nc] + h[2 * nc:3 * nc]          # (NC, N)
    m = (h + jnp.concatenate([s, s, s], axis=0)) * 0.25    # (3*NC, N)

    # Three output paths fused as one block-diagonal matmul: (3*NC, 3*NC) @ (3*NC, N).
    h2 = jnp.dot(wout_ref[...], m, preferred_element_type=jnp.float32)
    h2 = _bn_relu_t(h2, gout_ref[...], beout_ref[...])

    # Three contour convs fused as one block-diagonal matmul -> (3*OC, N), lane dense.
    y_ref[...] = (
        jnp.dot(wc_ref[...], h2, preferred_element_type=jnp.float32) + bc_ref[...]
    )


# ------------------------------- wrapper ----------------------------------- #

@functools.partial(jax.jit, static_argnames=("shape",))
def generator_forward(fused, z, shape):
    B, Cin, L = shape
    N = B * L
    nc = fused["Win_cat"].shape[0] // 3
    oc = fused["Wc_bd"].shape[0] // 3

    # XLA glue: projection Linear + relayout to transposed token layout (Cin, N).
    # (The (B, Cin*L) -> (Cin, B*L) relayout is not layout-preserving on TPU,
    # so it is left to XLA rather than forced into the kernel.)
    proj = z @ fused["WpT"] + fused["bp"]                    # (B, Cin*L)
    x_t = proj.reshape(B, Cin, L).transpose(1, 0, 2).reshape(Cin, N)

    vmem = pl.BlockSpec(memory_space=pltpu.MemorySpace.VMEM)
    y = pl.pallas_call(
        functools.partial(_gen_kernel, nc=nc),
        out_shape=jax.ShapeDtypeStruct((3 * oc, N), jnp.float32),
        in_specs=[vmem] * 11,
        out_specs=vmem,
    )(x_t,
      fused["g0"], fused["be0"],
      fused["Win_cat"], fused["gin_cat"], fused["bein_cat"],
      fused["Wout_bd"], fused["gout_cat"], fused["beout_cat"],
      fused["Wc_bd"], fused["bc_cat"])

    # Token layout (3*OC, B*L) -> three NCL tensors (B, OC, L), matching PyTorch.
    def split(i):
        return y[i * oc:(i + 1) * oc].reshape(oc, B, L).transpose(1, 0, 2)

    return split(0), split(1), split(2)


# --------------------------- parameter handling ----------------------------- #

def init_params(key, num_curves, latent_dim, in_channels, out_channels, num_channels):
    L, D, Cin, OC, NC = num_curves, latent_dim, in_channels, out_channels, num_channels
    ks = iter(jax.random.split(key, 64))

    def nrm(shape, scale=0.1):
        return (scale * jax.random.normal(next(ks), shape)).astype(jnp.float32)

    def gamma(shape):
        return jax.random.uniform(next(ks), shape, minval=0.5, maxval=1.5).astype(jnp.float32)

    return dict(
        Wp=nrm((Cin * L, D), 0.05),            # nn.Linear weight (out, in)
        bp=nrm((Cin * L,), 0.02),
        g0=gamma((Cin,)), be0=nrm((Cin,)),     # BatchNorm1d(in_channels)
        # three input paths (Cin -> NC): Conv1d weight (out, in), bias, BN gamma/beta
        Win=jnp.stack([nrm((NC, Cin)) for _ in range(3)]),
        bin=jnp.stack([nrm((NC,)) for _ in range(3)]),     # cancelled by BN (kept for reference)
        gin=jnp.stack([gamma((NC,)) for _ in range(3)]),
        bein=jnp.stack([nrm((NC,)) for _ in range(3)]),
        # three output paths (NC -> NC)
        Wout=jnp.stack([nrm((NC, NC)) for _ in range(3)]),
        bout=jnp.stack([nrm((NC,)) for _ in range(3)]),    # cancelled by BN (kept for reference)
        gout=jnp.stack([gamma((NC,)) for _ in range(3)]),
        beout=jnp.stack([nrm((NC,)) for _ in range(3)]),
        # three contour convs (NC -> OC, k=1)
        Wc=jnp.stack([nrm((OC, NC)) for _ in range(3)]),
        bc=jnp.stack([nrm((OC,)) for _ in range(3)]),
    )


def _block_diag(blocks):
    R = sum(b.shape[0] for b in blocks)
    C = sum(b.shape[1] for b in blocks)
    out = jnp.zeros((R, C), jnp.float32)
    r = c = 0
    for b in blocks:
        out = out.at[r:r + b.shape[0], c:c + b.shape[1]].set(b)
        r += b.shape[0]
        c += b.shape[1]
    return out


def fuse_params(p):
    """One-time host-side prep: concatenate / block-diagonalize the 3 paths.

    Conv biases (bin/bout) are intentionally dropped: a bias added immediately
    before BatchNorm is exactly cancelled by the mean subtraction.
    """
    NC = p["Win"].shape[1]
    Cin = p["Win"].shape[2]
    col = lambda v: v.reshape(-1, 1)
    return dict(
        WpT=p["Wp"].T,                                  # (D, Cin*L)
        bp=p["bp"][None, :],                            # (1, Cin*L)
        g0=col(p["g0"]), be0=col(p["be0"]),             # (Cin, 1)
        Win_cat=p["Win"].reshape(3 * NC, Cin),          # (3*NC, Cin)
        gin_cat=col(p["gin"]), bein_cat=col(p["bein"]), # (3*NC, 1)
        Wout_bd=_block_diag(list(p["Wout"])),           # (3*NC, 3*NC) block-diag
        gout_cat=col(p["gout"]), beout_cat=col(p["beout"]),
        Wc_bd=_block_diag(list(p["Wc"])),               # (3*OC, 3*NC) block-diag
        bc_cat=col(p["bc"]),                            # (3*OC, 1)
    )


# -------------------------- pure-JAX reference ----------------------------- #

def reference_forward(params, z, shape):
    """Faithful NCL (PyTorch-layout) reference, conv biases included."""
    B, Cin, L = shape
    x = (z @ params["Wp"].T + params["bp"]).reshape(B, Cin, L)

    def bn_relu(x, g, b):                               # x (B,C,L); g,b (C,)
        m = x.mean(axis=(0, 2), keepdims=True)
        v = ((x - m) ** 2).mean(axis=(0, 2), keepdims=True)
        y = (x - m) * jax.lax.rsqrt(v + EPS) * g[None, :, None] + b[None, :, None]
        return jnp.maximum(y, 0.0)

    def conv1x1(x, w, b):                               # w (O,C), b (O,)
        return jnp.einsum("oc,bcl->bol", w, x) + b[None, :, None]

    def path(x, w, b, g, be):
        return bn_relu(conv1x1(x, w, b), g, be)

    x = bn_relu(x, params["g0"], params["be0"])
    a = path(x, params["Win"][0], params["bin"][0], params["gin"][0], params["bein"][0])
    b = path(x, params["Win"][1], params["bin"][1], params["gin"][1], params["bein"][1])
    c = path(x, params["Win"][2], params["bin"][2], params["gin"][2], params["bein"][2])
    a_m = a / 2 + (b + c) / 4
    b_m = b / 2 + (a + c) / 4
    c_m = c / 2 + (a + b) / 4
    ao = path(a_m, params["Wout"][0], params["bout"][0], params["gout"][0], params["beout"][0])
    bo = path(b_m, params["Wout"][1], params["bout"][1], params["gout"][1], params["beout"][1])
    co = path(c_m, params["Wout"][2], params["bout"][2], params["gout"][2], params["beout"][2])
    y1 = conv1x1(ao, params["Wc"][0], params["bc"][0])
    y2 = conv1x1(bo, params["Wc"][1], params["bc"][1])
    y3 = conv1x1(co, params["Wc"][2], params["bc"][2])
    return y1, y2, y3


# --------------------------------- main ------------------------------------ #

if __name__ == "__main__":
    B = 2
    num_curves = 64
    latent_dim = 32
    in_channels, out_channels, num_channels = 16, 6, 32
    shape = (B, in_channels, num_curves)                # torch: project(z).reshape(shape)

    key = jax.random.PRNGKey(0)
    pkey, zkey = jax.random.split(key)
    params = init_params(pkey, num_curves, latent_dim, in_channels, out_channels, num_channels)
    fused = fuse_params(params)
    z = jax.random.normal(zkey, (B, latent_dim), dtype=jnp.float32)

    outs = generator_forward(fused, z, shape)
    outs = jax.block_until_ready(outs)

    refs = reference_forward(params, z, shape)
    for o, r in zip(outs, refs):
        assert o.shape == (B, out_channels, num_curves), o.shape
        np.testing.assert_allclose(np.asarray(o), np.asarray(r), rtol=2e-2, atol=2e-2)

    print("KERNEL_OK")
</pallas_src>

<mosaic_0001>
module attributes {stable_mosaic.version = 11 : i64} {
  func.func @_gen_kernel(%arg0: memref<16x128xf32, #tpu.memory_space<vmem>>, %arg1: memref<16x1xf32, #tpu.memory_space<vmem>>, %arg2: memref<16x1xf32, #tpu.memory_space<vmem>>, %arg3: memref<96x16xf32, #tpu.memory_space<vmem>>, %arg4: memref<96x1xf32, #tpu.memory_space<vmem>>, %arg5: memref<96x1xf32, #tpu.memory_space<vmem>>, %arg6: memref<96x96xf32, #tpu.memory_space<vmem>>, %arg7: memref<96x1xf32, #tpu.memory_space<vmem>>, %arg8: memref<96x1xf32, #tpu.memory_space<vmem>>, %arg9: memref<18x96xf32, #tpu.memory_space<vmem>>, %arg10: memref<18x1xf32, #tpu.memory_space<vmem>>, %arg11: memref<18x128xf32, #tpu.memory_space<vmem>>) attributes {dimension_semantics = [], scalar_prefetch = 0 : i64, scratch_operands = 0 : i64, tpu.core_type = #tpu.core_type<tc>} {
    %c0 = arith.constant 0 : index
    %c0_0 = arith.constant 0 : index
    %0 = vector.load %arg0[%c0, %c0_0] : memref<16x128xf32, #tpu.memory_space<vmem>>, vector<16x128xf32>
    %c0_1 = arith.constant 0 : index
    %c0_2 = arith.constant 0 : index
    %1 = vector.load %arg1[%c0_1, %c0_2] : memref<16x1xf32, #tpu.memory_space<vmem>>, vector<16x1xf32>
    %c0_3 = arith.constant 0 : index
    %c0_4 = arith.constant 0 : index
    %2 = vector.load %arg2[%c0_3, %c0_4] : memref<16x1xf32, #tpu.memory_space<vmem>>, vector<16x1xf32>
    %cst = arith.constant dense<0.000000e+00> : vector<16xf32>
    %3 = vector.multi_reduction <add>, %0, %cst [1] : vector<16x128xf32> to vector<16xf32>
    %4 = vector.shape_cast %3 : vector<16xf32> to vector<16x1xf32>
    %cst_5 = arith.constant 7.812500e-03 : f32
    %5 = vector.broadcast %cst_5 : f32 to vector<16x1xf32>
    %6 = arith.mulf %4, %5 : vector<16x1xf32>
    %7 = arith.mulf %0, %0 : vector<16x128xf32>
    %cst_6 = arith.constant dense<0.000000e+00> : vector<16xf32>
    %8 = vector.multi_reduction <add>, %7, %cst_6 [1] : vector<16x128xf32> to vector<16xf32>
    %9 = vector.shape_cast %8 : vector<16xf32> to vector<16x1xf32>
    %cst_7 = arith.constant 7.812500e-03 : f32
    %10 = vector.broadcast %cst_7 : f32 to vector<16x1xf32>
    %11 = arith.mulf %9, %10 : vector<16x1xf32>
    %12 = arith.mulf %6, %6 : vector<16x1xf32>
    %13 = arith.subf %11, %12 : vector<16x1xf32>
    %14 = vector.broadcast %6 : vector<16x1xf32> to vector<16x128xf32>
    %15 = arith.subf %0, %14 : vector<16x128xf32>
    %cst_8 = arith.constant 9.99999974E-6 : f32
    %16 = vector.broadcast %cst_8 : f32 to vector<16x1xf32>
    %17 = arith.addf %13, %16 : vector<16x1xf32>
    %18 = math.rsqrt %17 : vector<16x1xf32>
    %19 = vector.broadcast %18 : vector<16x1xf32> to vector<16x128xf32>
    %20 = arith.mulf %15, %19 : vector<16x128xf32>
    %21 = vector.broadcast %1 : vector<16x1xf32> to vector<16x128xf32>
    %22 = arith.mulf %20, %21 : vector<16x128xf32>
    %23 = vector.broadcast %2 : vector<16x1xf32> to vector<16x128xf32>
    %24 = arith.addf %22, %23 : vector<16x128xf32>
    %cst_9 = arith.constant 0.000000e+00 : f32
    %25 = vector.broadcast %cst_9 : f32 to vector<16x128xf32>
    %26 = arith.maximumf %24, %25 : vector<16x128xf32>
    %c0_10 = arith.constant 0 : index
    %c0_11 = arith.constant 0 : index
    %27 = vector.load %arg3[%c0_10, %c0_11] : memref<96x16xf32, #tpu.memory_space<vmem>>, vector<96x16xf32>
    %cst_12 = arith.constant dense<0.000000e+00> : vector<96x128xf32>
    %28 = tpu.matmul %27, %26, %cst_12 {dimension_numbers = #tpu.dot_dimension_numbers<[1], [0], [0], [1], [0, 0, 1, 1], [], []>} : vector<96x16xf32>, vector<16x128xf32>, vector<96x128xf32> -> vector<96x128xf32>
    %c0_13 = arith.constant 0 : index
    %c0_14 = arith.constant 0 : index
    %29 = vector.load %arg4[%c0_13, %c0_14] : memref<96x1xf32, #tpu.memory_space<vmem>>, vector<96x1xf32>
    %c0_15 = arith.constant 0 : index
    %c0_16 = arith.constant 0 : index
    %30 = vector.load %arg5[%c0_15, %c0_16] : memref<96x1xf32, #tpu.memory_space<vmem>>, vector<96x1xf32>
    %cst_17 = arith.constant dense<0.000000e+00> : vector<96xf32>
    %31 = vector.multi_reduction <add>, %28, %cst_17 [1] : vector<96x128xf32> to vector<96xf32>
    %32 = vector.shape_cast %31 : vector<96xf32> to vector<96x1xf32>
    %cst_18 = arith.constant 7.812500e-03 : f32
    %33 = vector.broadcast %cst_18 : f32 to vector<96x1xf32>
    %34 = arith.mulf %32, %33 : vector<96x1xf32>
    %35 = arith.mulf %28, %28 : vector<96x128xf32>
    %cst_19 = arith.constant dense<0.000000e+00> : vector<96xf32>
    %36 = vector.multi_reduction <add>, %35, %cst_19 [1] : vector<96x128xf32> to vector<96xf32>
    %37 = vector.shape_cast %36 : vector<96xf32> to vector<96x1xf32>
    %cst_20 = arith.constant 7.812500e-03 : f32
    %38 = vector.broadcast %cst_20 : f32 to vector<96x1xf32>
    %39 = arith.mulf %37, %38 : vector<96x1xf32>
    %40 = arith.mulf %34, %34 : vector<96x1xf32>
    %41 = arith.subf %39, %40 : vector<96x1xf32>
    %42 = vector.broadcast %34 : vector<96x1xf32> to vector<96x128xf32>
    %43 = arith.subf %28, %42 : vector<96x128xf32>
    %cst_21 = arith.constant 9.99999974E-6 : f32
    %44 = vector.broadcast %cst_21 : f32 to vector<96x1xf32>
    %45 = arith.addf %41, %44 : vector<96x1xf32>
    %46 = math.rsqrt %45 : vector<96x1xf32>
    %47 = vector.broadcast %46 : vector<96x1xf32> to vector<96x128xf32>
    %48 = arith.mulf %43, %47 : vector<96x128xf32>
    %49 = vector.broadcast %29 : vector<96x1xf32> to vector<96x128xf32>
    %50 = arith.mulf %48, %49 : vector<96x128xf32>
    %51 = vector.broadcast %30 : vector<96x1xf32> to vector<96x128xf32>
    %52 = arith.addf %50, %51 : vector<96x128xf32>
    %cst_22 = arith.constant 0.000000e+00 : f32
    %53 = vector.broadcast %cst_22 : f32 to vector<96x128xf32>
    %54 = arith.maximumf %52, %53 : vector<96x128xf32>
    %55 = vector.extract_strided_slice %54 {offsets = [0, 0], sizes = [32, 128], strides = [1, 1]} : vector<96x128xf32> to vector<32x128xf32>
    %56 = vector.extract_strided_slice %54 {offsets = [32, 0], sizes = [32, 128], strides = [1, 1]} : vector<96x128xf32> to vector<32x128xf32>
    %57 = arith.addf %55, %56 : vector<32x128xf32>
    %58 = vector.extract_strided_slice %54 {offsets = [64, 0], sizes = [32, 128], strides = [1, 1]} : vector<96x128xf32> to vector<32x128xf32>
    %59 = arith.addf %57, %58 : vector<32x128xf32>
    %60 = tpu.concatenate %59, %59, %59 in 0 : vector<32x128xf32>, vector<32x128xf32>, vector<32x128xf32> -> vector<96x128xf32>
    %61 = arith.addf %54, %60 : vector<96x128xf32>
    %cst_23 = arith.constant 2.500000e-01 : f32
    %62 = vector.broadcast %cst_23 : f32 to vector<96x128xf32>
    %63 = arith.mulf %61, %62 : vector<96x128xf32>
    %c0_24 = arith.constant 0 : index
    %c0_25 = arith.constant 0 : index
    %64 = vector.load %arg6[%c0_24, %c0_25] : memref<96x96xf32, #tpu.memory_space<vmem>>, vector<96x96xf32>
    %cst_26 = arith.constant dense<0.000000e+00> : vector<96x128xf32>
    %65 = tpu.matmul %64, %63, %cst_26 {dimension_numbers = #tpu.dot_dimension_numbers<[1], [0], [0], [1], [0, 0, 1, 1], [], []>} : vector<96x96xf32>, vector<96x128xf32>, vector<96x128xf32> -> vector<96x128xf32>
    %c0_27 = arith.constant 0 : index
    %c0_28 = arith.constant 0 : index
    %66 = vector.load %arg7[%c0_27, %c0_28] : memref<96x1xf32, #tpu.memory_space<vmem>>, vector<96x1xf32>
    %c0_29 = arith.constant 0 : index
    %c0_30 = arith.constant 0 : index
    %67 = vector.load %arg8[%c0_29, %c0_30] : memref<96x1xf32, #tpu.memory_space<vmem>>, vector<96x1xf32>
    %cst_31 = arith.constant dense<0.000000e+00> : vector<96xf32>
    %68 = vector.multi_reduction <add>, %65, %cst_31 [1] : vector<96x128xf32> to vector<96xf32>
    %69 = vector.shape_cast %68 : vector<96xf32> to vector<96x1xf32>
    %cst_32 = arith.constant 7.812500e-03 : f32
    %70 = vector.broadcast %cst_32 : f32 to vector<96x1xf32>
    %71 = arith.mulf %69, %70 : vector<96x1xf32>
    %72 = arith.mulf %65, %65 : vector<96x128xf32>
    %cst_33 = arith.constant dense<0.000000e+00> : vector<96xf32>
    %73 = vector.multi_reduction <add>, %72, %cst_33 [1] : vector<96x128xf32> to vector<96xf32>
    %74 = vector.shape_cast %73 : vector<96xf32> to vector<96x1xf32>
    %cst_34 = arith.constant 7.812500e-03 : f32
    %75 = vector.broadcast %cst_34 : f32 to vector<96x1xf32>
    %76 = arith.mulf %74, %75 : vector<96x1xf32>
    %77 = arith.mulf %71, %71 : vector<96x1xf32>
    %78 = arith.subf %76, %77 : vector<96x1xf32>
    %79 = vector.broadcast %71 : vector<96x1xf32> to vector<96x128xf32>
    %80 = arith.subf %65, %79 : vector<96x128xf32>
    %cst_35 = arith.constant 9.99999974E-6 : f32
    %81 = vector.broadcast %cst_35 : f32 to vector<96x1xf32>
    %82 = arith.addf %78, %81 : vector<96x1xf32>
    %83 = math.rsqrt %82 : vector<96x1xf32>
    %84 = vector.broadcast %83 : vector<96x1xf32> to vector<96x128xf32>
    %85 = arith.mulf %80, %84 : vector<96x128xf32>
    %86 = vector.broadcast %66 : vector<96x1xf32> to vector<96x128xf32>
    %87 = arith.mulf %85, %86 : vector<96x128xf32>
    %88 = vector.broadcast %67 : vector<96x1xf32> to vector<96x128xf32>
    %89 = arith.addf %87, %88 : vector<96x128xf32>
    %cst_36 = arith.constant 0.000000e+00 : f32
    %90 = vector.broadcast %cst_36 : f32 to vector<96x128xf32>
    %91 = arith.maximumf %89, %90 : vector<96x128xf32>
    %c0_37 = arith.constant 0 : index
    %c0_38 = arith.constant 0 : index
    %92 = vector.load %arg9[%c0_37, %c0_38] : memref<18x96xf32, #tpu.memory_space<vmem>>, vector<18x96xf32>
    %cst_39 = arith.constant dense<0.000000e+00> : vector<18x128xf32>
    %93 = tpu.matmul %92, %91, %cst_39 {dimension_numbers = #tpu.dot_dimension_numbers<[1], [0], [0], [1], [0, 0, 1, 1], [], []>} : vector<18x96xf32>, vector<96x128xf32>, vector<18x128xf32> -> vector<18x128xf32>
    %c0_40 = arith.constant 0 : index
    %c0_41 = arith.constant 0 : index
    %94 = vector.load %arg10[%c0_40, %c0_41] : memref<18x1xf32, #tpu.memory_space<vmem>>, vector<18x1xf32>
    %95 = vector.broadcast %94 : vector<18x1xf32> to vector<18x128xf32>
    %96 = arith.addf %93, %95 : vector<18x128xf32>
    %c0_42 = arith.constant 0 : index
    %c0_43 = arith.constant 0 : index
    %97 = vector.load %arg11[%c0_42, %c0_43] : memref<18x128xf32, #tpu.memory_space<vmem>>, vector<18x128xf32>
    tpu.vector_store %arg11[%c0_42, %c0_43], %96 {strides = array<i32>} : memref<18x128xf32, #tpu.memory_space<vmem>>, vector<18x128xf32>,
    return
  }
}

</mosaic_0001>

<llo_original>
// kernel: generator_forward.1
$region0: #{generator_forward.1}
  #allocation0 [shape = 'u32[]', space=smem, size = 0x4, offset = 0x4, fixed_abs, tag = 'smem constant byte address 0x4 - core index']
  #allocation1 [shape = 'u32[144,128]{1,0:T(1,128)}', space=vmem, size = 0x12000, scoped, tag = 'internal scratch']
  %s0 = inlined_call_operand.vmem [shape: f32[16,128], index: 0, kind: input, shape index: {}]
  %s1 = inlined_call_operand.vmem [shape: f32[16,1], index: 1, kind: input, shape index: {}]
  %s2 = inlined_call_operand.vmem [shape: f32[16,1], index: 2, kind: input, shape index: {}]
  %s3 = inlined_call_operand.vmem [shape: f32[96,16], index: 3, kind: input, shape index: {}]
  %s4 = inlined_call_operand.vmem [shape: f32[96,1], index: 4, kind: input, shape index: {}]
  %s5 = inlined_call_operand.vmem [shape: f32[96,1], index: 5, kind: input, shape index: {}]
  %s6 = inlined_call_operand.vmem [shape: f32[96,96], index: 6, kind: input, shape index: {}]
  %s7 = inlined_call_operand.vmem [shape: f32[96,1], index: 7, kind: input, shape index: {}]
  %s8 = inlined_call_operand.vmem [shape: f32[96,1], index: 8, kind: input, shape index: {}]
  %s9 = inlined_call_operand.vmem [shape: f32[18,96], index: 9, kind: input, shape index: {}]
  %s10 = inlined_call_operand.vmem [shape: f32[18,1], index: 10, kind: input, shape index: {}]
  %s11 = inlined_call_operand.vmem [shape: f32[18,128], index: 11, kind: output, shape index: {}]
  %s12 = sld [smem:[#allocation0]]
  $region54: #{generator_forward.1} parent=0
    _
  %s14 = ssub.s32 1, %s12
  %s15 = scalar_select 0, %s14, %s12
  // Predicated region
  $region2: #{generator_forward.1} parent=0 // pred_check
    _
  $region3: #{generator_forward.1} parent=0 // pred_check_branch
    %17 = sbr.rel (0) target = $region5
  $region4: #{generator_forward.1} parent=0 // pred_region
    _
  $region5: #{generator_forward.1} parent=0 // pred_fallthru
    _
  // Predicated region
  $region6: #{generator_forward.1} parent=0 // pred_check
    _
  $region7: #{generator_forward.1} parent=0 // pred_check_branch
    %19 = sbr.rel (0) target = $region9
  $region8: #{generator_forward.1} parent=0 // pred_region
    _
  $region9: #{generator_forward.1} parent=0 // pred_fallthru
    _
  // Predicated region
  $region10: #{generator_forward.1} parent=0 // pred_check
    _
  $region11: #{generator_forward.1} parent=0 // pred_check_branch
    %21 = sbr.rel (0) target = $region13
  $region12: #{generator_forward.1} parent=0 // pred_region
    _
  $region13: #{generator_forward.1} parent=0 // pred_fallthru
    _
  // Predicated region
  $region14: #{generator_forward.1} parent=0 // pred_check
    _
  $region15: #{generator_forward.1} parent=0 // pred_check_branch
    %23 = sbr.rel (0) target = $region17
  $region16: #{generator_forward.1} parent=0 // pred_region
    _
  $region17: #{generator_forward.1} parent=0 // pred_fallthru
    _
  // Predicated region
  $region18: #{generator_forward.1} parent=0 // pred_check
    _
  $region19: #{generator_forward.1} parent=0 // pred_check_branch
    %25 = sbr.rel (0) target = $region21
  $region20: #{generator_forward.1} parent=0 // pred_region
    _
  $region21: #{generator_forward.1} parent=0 // pred_fallthru
    _
  // Predicated region
  $region22: #{generator_forward.1} parent=0 // pred_check
    _
  $region23: #{generator_forward.1} parent=0 // pred_check_branch
    %27 = sbr.rel (0) target = $region25
  $region24: #{generator_forward.1} parent=0 // pred_region
    _
  $region25: #{generator_forward.1} parent=0 // pred_fallthru
    _
  // Predicated region
  $region26: #{generator_forward.1} parent=0 // pred_check
    _
  $region27: #{generator_forward.1} parent=0 // pred_check_branch
    %29 = sbr.rel (0) target = $region29
  $region28: #{generator_forward.1} parent=0 // pred_region
    _
  $region29: #{generator_forward.1} parent=0 // pred_fallthru
    _
  // Predicated region
  $region30: #{generator_forward.1} parent=0 // pred_check
    _
  $region31: #{generator_forward.1} parent=0 // pred_check_branch
    %31 = sbr.rel (0) target = $region33
  $region32: #{generator_forward.1} parent=0 // pred_region
    _
  $region33: #{generator_forward.1} parent=0 // pred_fallthru
    _
  // Predicated region
  $region34: #{generator_forward.1} parent=0 // pred_check
    _
  $region35: #{generator_forward.1} parent=0 // pred_check_branch
    %33 = sbr.rel (0) target = $region37
  $region36: #{generator_forward.1} parent=0 // pred_region
    _
  $region37: #{generator_forward.1} parent=0 // pred_fallthru
    _
  // Predicated region
  $region38: #{generator_forward.1} parent=0 // pred_check
    _
  $region39: #{generator_forward.1} parent=0 // pred_check_branch
    %35 = sbr.rel (0) target = $region41
  $region40: #{generator_forward.1} parent=0 // pred_region
    _
  $region41: #{generator_forward.1} parent=0 // pred_fallthru
    _
  // Predicated region
  $region42: #{generator_forward.1} parent=0 // pred_check
    _
  $region43: #{generator_forward.1} parent=0 // pred_check_branch
    %37 = sbr.rel (0) target = $region45
  $region44: #{generator_forward.1} parent=0 // pred_region
    _
  $region45: #{generator_forward.1} parent=0 // pred_fallthru
    _
  %v38 = vld [vmem:[%s0] sm:$0xff]
  %v39 = vld [vmem:[%s0 + $0x8] sm:$0xff]
  %v40 = vld [vmem:[%s1] sm:$0xff]
  %v41 = vld [vmem:[%s1 + $0x8] sm:$0xff]
  %v42 = vld [vmem:[%s2] sm:$0xff]
  %v43 = vld [vmem:[%s2 + $0x8] sm:$0xff]
  %44 = vadd.xlane.f32.xlu0 %v38
  %v45 = vpop.xlane.xlu0 %44
  %46 = vadd.xlane.f32.xlu0 %v39
  %v47 = vpop.xlane.xlu0 %46
  %v48 = vmul.f32 %v45, 0.0078125
  %v49 = vmul.f32 %v47, 0.0078125
  %v50 = vmul.f32 %v38, %v38
  %v51 = vmul.f32 %v39, %v39
  %52 = vadd.xlane.f32.xlu0 %v50
  %v53 = vpop.xlane.xlu0 %52
  %54 = vadd.xlane.f32.xlu0 %v51
  %v55 = vpop.xlane.xlu0 %54
  %v56 = vmul.f32 %v53, 0.0078125
  %v57 = vmul.f32 %v55, 0.0078125
  %v58 = vmul.f32 %v48, %v48
  %v59 = vmul.f32 %v49, %v49
  %v60 = vsub.f32 %v56, %v58
  %v61 = vsub.f32 %v57, %v59
  %v62 = vsub.f32 %v38, %v48
  %v63 = vsub.f32 %v39, %v49
  %v64 = vadd.f32 %v60, 1e-05
  %v65 = vadd.f32 %v61, 1e-05
  %v66 = vrsqrt.pop %v64
  %v67 = vrsqrt.pop %v65
  %v68 = vmul.f32 %v62, %v66
  %v69 = vmul.f32 %v63, %v67
  %71 = vset.pattern.permute.xlu0 0
  %72 = vperm.xlu0 %71, %v40
  %v73 = vpop.permute.xlu0 %72
  %76 = vset.pattern.permute.xlu0 0
  %77 = vperm.xlu0 %76, %v41
  %v78 = vpop.permute.xlu0 %77
  %v80 = vmul.f32 %v68, %v73
  %v81 = vmul.f32 %v69, %v78
  %83 = vset.pattern.permute.xlu0 0
  %84 = vperm.xlu0 %83, %v42
  %v85 = vpop.permute.xlu0 %84
  %88 = vset.pattern.permute.xlu0 0
  %89 = vperm.xlu0 %88, %v43
  %v90 = vpop.permute.xlu0 %89
  %v92 = vadd.f32 %v80, %v85
  %v93 = vadd.f32 %v81, %v90
  %v94 = vmax.f32 %v92, 0.0
  %v95 = vmax.f32 %v93, 0.0
  %v96 = vld [vmem:[%s3] sm:$0xff]
  %v97 = vld [vmem:[%s3 + $0x8] sm:$0xff]
  %v98 = vld [vmem:[%s3 + $0x10] sm:$0xff]
  %v99 = vld [vmem:[%s3 + $0x18] sm:$0xff]
  %v100 = vld [vmem:[%s3 + $0x20] sm:$0xff]
  %v101 = vld [vmem:[%s3 + $0x28] sm:$0xff]
  %v102 = vld [vmem:[%s3 + $0x30] sm:$0xff]
  %v103 = vld [vmem:[%s3 + $0x38] sm:$0xff]
  %v104 = vld [vmem:[%s3 + $0x40] sm:$0xff]
  %v105 = vld [vmem:[%s3 + $0x48] sm:$0xff]
  %v106 = vld [vmem:[%s3 + $0x50] sm:$0xff]
  %v107 = vld [vmem:[%s3 + $0x58] sm:$0xff]
  %vm108 = vcmask 130048
  %v110 = vsel %vm108, %v96, 0
  %v113 = vsel %vm108, %v97, 0
  %v116 = vsel %vm108, %v98, 0
  %v119 = vsel %vm108, %v99, 0
  %v122 = vsel %vm108, %v100, 0
  %v125 = vsel %vm108, %v101, 0
  %v128 = vsel %vm108, %v102, 0
  %v131 = vsel %vm108, %v103, 0
  %v134 = vsel %vm108, %v104, 0
  %v137 = vsel %vm108, %v105, 0
  %v140 = vsel %vm108, %v106, 0
  %v143 = vsel %vm108, %v107, 0
  %145 = vmatprep.subr.mxu0 0.0
  %146 = vmatpush1.msra.mxu0 0.0
  %147 = vmatprep.subr.mxu0 0.0
  %148 = vmatpush1.msra.mxu0 0.0
  %149 = vmatprep.subr.mxu0 0.0
  %150 = vmatpush1.msra.mxu0 0.0
  %151 = vmatprep.subr.mxu0 0.0
  %152 = vmatpush1.msra.mxu0 0.0
  %153 = vmatprep.subr.mxu0 0.0
  %154 = vmatpush1.msra.mxu0 0.0
  %155 = vmatprep.subr.mxu0 0.0
  %156 = vmatpush1.msra.mxu0 0.0
  %157 = vmatprep.subr.mxu0 0.0
  %158 = vmatpush1.msra.mxu0 0.0
  %159 = vmatprep.subr.mxu0 0.0
  %160 = vmatpush1.msra.mxu0 0.0
  %161 = vmatprep.subr.mxu0 0.0
  %162 = vmatpush1.msra.mxu0 0.0
  %163 = vmatprep.subr.mxu0 0.0
  %164 = vmatpush1.msra.mxu0 0.0
  %165 = vmatprep.subr.mxu0 0.0
  %166 = vmatpush1.msra.mxu0 0.0
  %167 = vmatprep.subr.mxu0 0.0
  %168 = vmatpush1.msra.mxu0 0.0
  %169 = vmatprep.subr.mxu0 0.0
  %170 = vmatpush1.msra.mxu0 0.0
  %171 = vmatprep.subr.mxu0 0.0
  %172 = vmatpush1.msra.mxu0 0.0
  %173 = vmatprep.subr.mxu0 0.0
  %174 = vmatpush1.msra.mxu0 %v95
  %175 = vmatprep.subr.mxu0 0.0
  %176 = vmatpush1.msra.mxu0 %v94
  %177 = vmatprep.subr.mxu0 0.0
  %178 = vmatpush2.msra.mxu0 0.0
  %179 = vmatprep.subr.mxu0 0.0
  %180 = vmatpush2.msra.mxu0 0.0
  %181 = vmatprep.subr.mxu0 0.0
  %182 = vmatpush2.msra.mxu0 0.0
  %183 = vmatprep.subr.mxu0 0.0
  %184 = vmatpush2.msra.mxu0 0.0
  %185 = vmatprep.subr.mxu0 0.0
  %186 = vmatpush2.msra.mxu0 0.0
  %187 = vmatprep.subr.mxu0 0.0
  %188 = vmatpush2.msra.mxu0 0.0
  %189 = vmatprep.subr.mxu0 0.0
  %190 = vmatpush2.msra.mxu0 0.0
  %191 = vmatprep.subr.mxu0 0.0
  %192 = vmatpush2.msra.mxu0 0.0
  %193 = vmatprep.subr.mxu0 0.0
  %194 = vmatpush2.msra.mxu0 0.0
  %195 = vmatprep.subr.mxu0 0.0
  %196 = vmatpush2.msra.mxu0 0.0
  %197 = vmatprep.subr.mxu0 0.0
  %198 = vmatpush2.msra.mxu0 0.0
  %199 = vmatprep.subr.mxu0 0.0
  %200 = vmatpush2.msra.mxu0 0.0
  %201 = vmatprep.subr.mxu0 0.0
  %202 = vmatpush2.msra.mxu0 0.0
  %203 = vmatprep.subr.mxu0 0.0
  %204 = vmatpush2.msra.mxu0 0.0
  %205 = vmatprep.subr.mxu0 0.0
  %206 = vmatpush2.msra.mxu0 0.0
  %207 = vmatprep.subr.mxu0 0.0
  %208 = vmatpush2.msra.mxu0 0.0
  %209 = vmatprep.mubr.f32.mxu0 0.0
  %210 = vmatmul.mubr.f32.gmra.mxu0 %v110
  %v211 = vpop.f32.mrf.mxu0
  %v212 = vadd.f32 0.0, %v211
  %v213 = vpop.f32.mrf.mxu0
  %214 = vmatprep.mubr.f32.mxu0 0.0
  %215 = vmatmul.mubr.f32.gmra.mxu0 %v113
  %v216 = vpop.f32.mrf.mxu0
  %v217 = vadd.f32 0.0, %v216
  %v218 = vpop.f32.mrf.mxu0
  %219 = vmatprep.mubr.f32.mxu0 0.0
  %220 = vmatmul.mubr.f32.gmra.mxu0 %v116
  %v221 = vpop.f32.mrf.mxu0
  %v222 = vadd.f32 0.0, %v221
  %v223 = vpop.f32.mrf.mxu0
  %224 = vmatprep.mubr.f32.mxu0 0.0
  %225 = vmatmul.mubr.f32.gmra.mxu0 %v119
  %v226 = vpop.f32.mrf.mxu0
  %v227 = vadd.f32 0.0, %v226
  %v228 = vpop.f32.mrf.mxu0
  %229 = vmatprep.mubr.f32.mxu0 0.0
  %230 = vmatmul.mubr.f32.gmra.mxu0 %v122
  %v231 = vpop.f32.mrf.mxu0
  %v232 = vadd.f32 0.0, %v231
  %v233 = vpop.f32.mrf.mxu0
  %234 = vmatprep.mubr.f32.mxu0 0.0
  %235 = vmatmul.mubr.f32.gmra.mxu0 %v125
  %v236 = vpop.f32.mrf.mxu0
  %v237 = vadd.f32 0.0, %v236
  %v238 = vpop.f32.mrf.mxu0
  %239 = vmatprep.mubr.f32.mxu0 0.0
  %240 = vmatmul.mubr.f32.gmra.mxu0 %v128
  %v241 = vpop.f32.mrf.mxu0
  %v242 = vadd.f32 0.0, %v241
  %v243 = vpop.f32.mrf.mxu0
  %244 = vmatprep.mubr.f32.mxu0 0.0
  %245 = vmatmul.mubr.f32.gmra.mxu0 %v131
  %v246 = vpop.f32.mrf.mxu0
  %v247 = vadd.f32 0.0, %v246
  %v248 = vpop.f32.mrf.mxu0
  %249 = vmatprep.mubr.f32.mxu0 0.0
  %250 = vmatmul.mubr.f32.gmra.mxu0 %v134
  %v251 = vpop.f32.mrf.mxu0
  %v252 = vadd.f32 0.0, %v251
  %v253 = vpop.f32.mrf.mxu0
  %254 = vmatprep.mubr.f32.mxu0 0.0
  %255 = vmatmul.mubr.f32.gmra.mxu0 %v137
  %v256 = vpop.f32.mrf.mxu0
  %v257 = vadd.f32 0.0, %v256
  %v258 = vpop.f32.mrf.mxu0
  %259 = vmatprep.mubr.f32.mxu0 0.0
  %260 = vmatmul.mubr.f32.gmra.mxu0 %v140
  %v261 = vpop.f32.mrf.mxu0
  %v262 = vadd.f32 0.0, %v261
  %v263 = vpop.f32.mrf.mxu0
  %264 = vmatprep.mubr.f32.mxu0 0.0
  %265 = vmatmul.mubr.f32.gmra.mxu0 %v143
  %v266 = vpop.f32.mrf.mxu0
  %v267 = vadd.f32 0.0, %v266
  %v268 = vpop.f32.mrf.mxu0
  %269 = vdwg.mxu0
  %v270 = vld [vmem:[%s4] sm:$0xff]
  %v271 = vld [vmem:[%s4 + $0x8] sm:$0xff]
  %v272 = vld [vmem:[%s4 + $0x10] sm:$0xff]
  %v273 = vld [vmem:[%s4 + $0x18] sm:$0xff]
  %v274 = vld [vmem:[%s4 + $0x20] sm:$0xff]
  %v275 = vld [vmem:[%s4 + $0x28] sm:$0xff]
  %v276 = vld [vmem:[%s4 + $0x30] sm:$0xff]
  %v277 = vld [vmem:[%s4 + $0x38] sm:$0xff]
  %v278 = vld [vmem:[%s4 + $0x40] sm:$0xff]
  %v279 = vld [vmem:[%s4 + $0x48] sm:$0xff]
  %v280 = vld [vmem:[%s4 + $0x50] sm:$0xff]
  %v281 = vld [vmem:[%s4 + $0x58] sm:$0xff]
  %v282 = vld [vmem:[%s5] sm:$0xff]
  %v283 = vld [vmem:[%s5 + $0x8] sm:$0xff]
  %v284 = vld [vmem:[%s5 + $0x10] sm:$0xff]
  %v285 = vld [vmem:[%s5 + $0x18] sm:$0xff]
  %v286 = vld [vmem:[%s5 + $0x20] sm:$0xff]
  %v287 = vld [vmem:[%s5 + $0x28] sm:$0xff]
  %v288 = vld [vmem:[%s5 + $0x30] sm:$0xff]
  %v289 = vld [vmem:[%s5 + $0x38] sm:$0xff]
  %v290 = vld [vmem:[%s5 + $0x40] sm:$0xff]
  %v291 = vld [vmem:[%s5 + $0x48] sm:$0xff]
  %v292 = vld [vmem:[%s5 + $0x50] sm:$0xff]
  %v293 = vld [vmem:[%s5 + $0x58] sm:$0xff]
  %294 = vadd.xlane.f32.xlu0 %v212
  %v295 = vpop.xlane.xlu0 %294
  %296 = vadd.xlane.f32.xlu0 %v217
  %v297 = vpop.xlane.xlu0 %296
  %298 = vadd.xlane.f32.xlu0 %v222
  %v299 = vpop.xlane.xlu0 %298
  %300 = vadd.xlane.f32.xlu0 %v227
  %v301 = vpop.xlane.xlu0 %300
  %302 = vadd.xlane.f32.xlu0 %v232
  %v303 = vpop.xlane.xlu0 %302
  %304 = vadd.xlane.f32.xlu0 %v237
  %v305 = vpop.xlane.xlu0 %304
  %306 = vadd.xlane.f32.xlu0 %v242
  %v307 = vpop.xlane.xlu0 %306
  %308 = vadd.xlane.f32.xlu0 %v247
  %v309 = vpop.xlane.xlu0 %308
  %310 = vadd.xlane.f32.xlu0 %v252
  %v311 = vpop.xlane.xlu0 %310
  %312 = vadd.xlane.f32.xlu0 %v257
  %v313 = vpop.xlane.xlu0 %312
  %314 = vadd.xlane.f32.xlu0 %v262
  %v315 = vpop.xlane.xlu0 %314
  %316 = vadd.xlane.f32.xlu0 %v267
  %v317 = vpop.xlane.xlu0 %316
  %v318 = vmul.f32 %v295, 0.0078125
  %v319 = vmul.f32 %v297, 0.0078125
  %v320 = vmul.f32 %v299, 0.0078125
  %v321 = vmul.f32 %v301, 0.0078125
  %v322 = vmul.f32 %v303, 0.0078125
  %v323 = vmul.f32 %v305, 0.0078125
  %v324 = vmul.f32 %v307, 0.0078125
  %v325 = vmul.f32 %v309, 0.0078125
  %v326 = vmul.f32 %v311, 0.0078125
  %v327 = vmul.f32 %v313, 0.0078125
  %v328 = vmul.f32 %v315, 0.0078125
  %v329 = vmul.f32 %v317, 0.0078125
  %v330 = vmul.f32 %v212, %v212
  %v331 = vmul.f32 %v217, %v217
  %v332 = vmul.f32 %v222, %v222
  %v333 = vmul.f32 %v227, %v227
  %v334 = vmul.f32 %v232, %v232
  %v335 = vmul.f32 %v237, %v237
  %v336 = vmul.f32 %v242, %v242
  %v337 = vmul.f32 %v247, %v247
  %v338 = vmul.f32 %v252, %v252
  %v339 = vmul.f32 %v257, %v257
  %v340 = vmul.f32 %v262, %v262
  %v341 = vmul.f32 %v267, %v267
  %342 = vadd.xlane.f32.xlu0 %v330
  %v343 = vpop.xlane.xlu0 %342
  %344 = vadd.xlane.f32.xlu0 %v331
  %v345 = vpop.xlane.xlu0 %344
  %346 = vadd.xlane.f32.xlu0 %v332
  %v347 = vpop.xlane.xlu0 %346
  %348 = vadd.xlane.f32.xlu0 %v333
  %v349 = vpop.xlane.xlu0 %348
  %350 = vadd.xlane.f32.xlu0 %v334
  %v351 = vpop.xlane.xlu0 %350
  %352 = vadd.xlane.f32.xlu0 %v335
  %v353 = vpop.xlane.xlu0 %352
  %354 = vadd.xlane.f32.xlu0 %v336
  %v355 = vpop.xlane.xlu0 %354
  %356 = vadd.xlane.f32.xlu0 %v337
  %v357 = vpop.xlane.xlu0 %356
  %358 = vadd.xlane.f32.xlu0 %v338
  %v359 = vpop.xlane.xlu0 %358
  %360 = vadd.xlane.f32.xlu0 %v339
  %v361 = vpop.xlane.xlu0 %360
  %362 = vadd.xlane.f32.xlu0 %v340
  %v363 = vpop.xlane.xlu0 %362
  %364 = vadd.xlane.f32.xlu0 %v341
  %v365 = vpop.xlane.xlu0 %364
  %v366 = vmul.f32 %v343, 0.0078125
  %v367 = vmul.f32 %v345, 0.0078125
  %v368 = vmul.f32 %v347, 0.0078125
  %v369 = vmul.f32 %v349, 0.0078125
  %v370 = vmul.f32 %v351, 0.0078125
  %v371 = vmul.f32 %v353, 0.0078125
  %v372 = vmul.f32 %v355, 0.0078125
  %v373 = vmul.f32 %v357, 0.0078125
  %v374 = vmul.f32 %v359, 0.0078125
  %v375 = vmul.f32 %v361, 0.0078125
  %v376 = vmul.f32 %v363, 0.0078125
  %v377 = vmul.f32 %v365, 0.0078125
  %v378 = vmul.f32 %v318, %v318
  %v379 = vmul.f32 %v319, %v319
  %v380 = vmul.f32 %v320, %v320
  %v381 = vmul.f32 %v321, %v321
  %v382 = vmul.f32 %v322, %v322
  %v383 = vmul.f32 %v323, %v323
  %v384 = vmul.f32 %v324, %v324
  %v385 = vmul.f32 %v325, %v325
  %v386 = vmul.f32 %v326, %v326
  %v387 = vmul.f32 %v327, %v327
  %v388 = vmul.f32 %v328, %v328
  %v389 = vmul.f32 %v329, %v329
  %v390 = vsub.f32 %v366, %v378
  %v391 = vsub.f32 %v367, %v379
  %v392 = vsub.f32 %v368, %v380
  %v393 = vsub.f32 %v369, %v381
  %v394 = vsub.f32 %v370, %v382
  %v395 = vsub.f32 %v371, %v383
  %v396 = vsub.f32 %v372, %v384
  %v397 = vsub.f32 %v373, %v385
  %v398 = vsub.f32 %v374, %v386
  %v399 = vsub.f32 %v375, %v387
  %v400 = vsub.f32 %v376, %v388
  %v401 = vsub.f32 %v377, %v389
  %v402 = vsub.f32 %v212, %v318
  %v403 = vsub.f32 %v217, %v319
  %v404 = vsub.f32 %v222, %v320
  %v405 = vsub.f32 %v227, %v321
  %v406 = vsub.f32 %v232, %v322
  %v407 = vsub.f32 %v237, %v323
  %v408 = vsub.f32 %v242, %v324
  %v409 = vsub.f32 %v247, %v325
  %v410 = vsub.f32 %v252, %v326
  %v411 = vsub.f32 %v257, %v327
  %v412 = vsub.f32 %v262, %v328
  %v413 = vsub.f32 %v267, %v329
  %v414 = vadd.f32 %v390, 1e-05
  %v415 = vadd.f32 %v391, 1e-05
  %v416 = vadd.f32 %v392, 1e-05
  %v417 = vadd.f32 %v393, 1e-05
  %v418 = vadd.f32 %v394, 1e-05
  %v419 = vadd.f32 %v395, 1e-05
  %v420 = vadd.f32 %v396, 1e-05
  %v421 = vadd.f32 %v397, 1e-05
  %v422 = vadd.f32 %v398, 1e-05
  %v423 = vadd.f32 %v399, 1e-05
  %v424 = vadd.f32 %v400, 1e-05
  %v425 = vadd.f32 %v401, 1e-05
  %v426 = vrsqrt.pop %v414
  %v427 = vrsqrt.pop %v415
  %v428 = vrsqrt.pop %v416
  %v429 = vrsqrt.pop %v417
  %v430 = vrsqrt.pop %v418
  %v431 = vrsqrt.pop %v419
  %v432 = vrsqrt.pop %v420
  %v433 = vrsqrt.pop %v421
  %v434 = vrsqrt.pop %v422
  %v435 = vrsqrt.pop %v423
  %v436 = vrsqrt.pop %v424
  %v437 = vrsqrt.pop %v425
  %v438 = vmul.f32 %v402, %v426
  %v439 = vmul.f32 %v403, %v427
  %v440 = vmul.f32 %v404, %v428
  %v441 = vmul.f32 %v405, %v429
  %v442 = vmul.f32 %v406, %v430
  %v443 = vmul.f32 %v407, %v431
  %v444 = vmul.f32 %v408, %v432
  %v445 = vmul.f32 %v409, %v433
  %v446 = vmul.f32 %v410, %v434
  %v447 = vmul.f32 %v411, %v435
  %v448 = vmul.f32 %v412, %v436
  %v449 = vmul.f32 %v413, %v437
  %451 = vset.pattern.permute.xlu0 0
  %452 = vperm.xlu0 %451, %v270
  %v453 = vpop.permute.xlu0 %452
  %456 = vset.pattern.permute.xlu0 0
  %457 = vperm.xlu0 %456, %v271
  %v458 = vpop.permute.xlu0 %457
  %461 = vset.pattern.permute.xlu0 0
  %462 = vperm.xlu0 %461, %v272
  %v463 = vpop.permute.xlu0 %462
  %466 = vset.pattern.permute.xlu0 0
  %467 = vperm.xlu0 %466, %v273
  %v468 = vpop.permute.xlu0 %467
  %471 = vset.pattern.permute.xlu0 0
  %472 = vperm.xlu0 %471, %v274
  %v473 = vpop.permute.xlu0 %472
  %476 = vset.pattern.permute.xlu0 0
  %477 = vperm.xlu0 %476, %v275
  %v478 = vpop.permute.xlu0 %477
  %481 = vset.pattern.permute.xlu0 0
  %482 = vperm.xlu0 %481, %v276
  %v483 = vpop.permute.xlu0 %482
  %486 = vset.pattern.permute.xlu0 0
  %487 = vperm.xlu0 %486, %v277
  %v488 = vpop.permute.xlu0 %487
  %491 = vset.pattern.permute.xlu0 0
  %492 = vperm.xlu0 %491, %v278
  %v493 = vpop.permute.xlu0 %492
  %496 = vset.pattern.permute.xlu0 0
  %497 = vperm.xlu0 %496, %v279
  %v498 = vpop.permute.xlu0 %497
  %501 = vset.pattern.permute.xlu0 0
  %502 = vperm.xlu0 %501, %v280
  %v503 = vpop.permute.xlu0 %502
  %506 = vset.pattern.permute.xlu0 0
  %507 = vperm.xlu0 %506, %v281
  %v508 = vpop.permute.xlu0 %507
  %v510 = vmul.f32 %v438, %v453
  %v511 = vmul.f32 %v439, %v458
  %v512 = vmul.f32 %v440, %v463
  %v513 = vmul.f32 %v441, %v468
  %v514 = vmul.f32 %v442, %v473
  %v515 = vmul.f32 %v443, %v478
  %v516 = vmul.f32 %v444, %v483
  %v517 = vmul.f32 %v445, %v488
  %v518 = vmul.f32 %v446, %v493
  %v519 = vmul.f32 %v447, %v498
  %v520 = vmul.f32 %v448, %v503
  %v521 = vmul.f32 %v449, %v508
  %523 = vset.pattern.permute.xlu0 0
  %524 = vperm.xlu0 %523, %v282
  %v525 = vpop.permute.xlu0 %524
  %528 = vset.pattern.permute.xlu0 0
  %529 = vperm.xlu0 %528, %v283
  %v530 = vpop.permute.xlu0 %529
  %533 = vset.pattern.permute.xlu0 0
  %534 = vperm.xlu0 %533, %v284
  %v535 = vpop.permute.xlu0 %534
  %538 = vset.pattern.permute.xlu0 0
  %539 = vperm.xlu0 %538, %v285
  %v540 = vpop.permute.xlu0 %539
  %543 = vset.pattern.permute.xlu0 0
  %544 = vperm.xlu0 %543, %v286
  %v545 = vpop.permute.xlu0 %544
  %548 = vset.pattern.permute.xlu0 0
  %549 = vperm.xlu0 %548, %v287
  %v550 = vpop.permute.xlu0 %549
  %553 = vset.pattern.permute.xlu0 0
  %554 = vperm.xlu0 %553, %v288
  %v555 = vpop.permute.xlu0 %554
  %558 = vset.pattern.permute.xlu0 0
  %559 = vperm.xlu0 %558, %v289
  %v560 = vpop.permute.xlu0 %559
  %563 = vset.pattern.permute.xlu0 0
  %564 = vperm.xlu0 %563, %v290
  %v565 = vpop.permute.xlu0 %564
  %568 = vset.pattern.permute.xlu0 0
  %569 = vperm.xlu0 %568, %v291
  %v570 = vpop.permute.xlu0 %569
  %573 = vset.pattern.permute.xlu0 0
  %574 = vperm.xlu0 %573, %v292
  %v575 = vpop.permute.xlu0 %574
  %578 = vset.pattern.permute.xlu0 0
  %579 = vperm.xlu0 %578, %v293
  %v580 = vpop.permute.xlu0 %579
  %v582 = vadd.f32 %v510, %v525
  %v583 = vadd.f32 %v511, %v530
  %v584 = vadd.f32 %v512, %v535
  %v585 = vadd.f32 %v513, %v540
  %v586 = vadd.f32 %v514, %v545
  %v587 = vadd.f32 %v515, %v550
  %v588 = vadd.f32 %v516, %v555
  %v589 = vadd.f32 %v517, %v560
  %v590 = vadd.f32 %v518, %v565
  %v591 = vadd.f32 %v519, %v570
  %v592 = vadd.f32 %v520, %v575
  %v593 = vadd.f32 %v521, %v580
  %v594 = vmax.f32 %v582, 0.0
  %v595 = vmax.f32 %v583, 0.0
  %v596 = vmax.f32 %v584, 0.0
  %v597 = vmax.f32 %v585, 0.0
  %v598 = vmax.f32 %v586, 0.0
  %v599 = vmax.f32 %v587, 0.0
  %v600 = vmax.f32 %v588, 0.0
  %v601 = vmax.f32 %v589, 0.0
  %v602 = vmax.f32 %v590, 0.0
  %v603 = vmax.f32 %v591, 0.0
  %v604 = vmax.f32 %v592, 0.0
  %v605 = vmax.f32 %v593, 0.0
  %v606 = vadd.f32 %v594, %v598
  %v607 = vadd.f32 %v595, %v599
  %v608 = vadd.f32 %v596, %v600
  %v609 = vadd.f32 %v597, %v601
  %v610 = vadd.f32 %v606, %v602
  %v611 = vadd.f32 %v607, %v603
  %v612 = vadd.f32 %v608, %v604
  %v613 = vadd.f32 %v609, %v605
  %v614 = vadd.f32 %v594, %v610
  %v615 = vadd.f32 %v595, %v611
  %v616 = vadd.f32 %v596, %v612
  %v617 = vadd.f32 %v597, %v613
  %v618 = vadd.f32 %v598, %v610
  %v619 = vadd.f32 %v599, %v611
  %v620 = vadd.f32 %v600, %v612
  %v621 = vadd.f32 %v601, %v613
  %v622 = vadd.f32 %v602, %v610
  %v623 = vadd.f32 %v603, %v611
  %v624 = vadd.f32 %v604, %v612
  %v625 = vadd.f32 %v605, %v613
  %v626 = vmul.f32 %v614, 0.25
  %v627 = vmul.f32 %v615, 0.25
  %v628 = vmul.f32 %v616, 0.25
  %v629 = vmul.f32 %v617, 0.25
  %v630 = vmul.f32 %v618, 0.25
  %v631 = vmul.f32 %v619, 0.25
  %v632 = vmul.f32 %v620, 0.25
  %v633 = vmul.f32 %v621, 0.25
  %v634 = vmul.f32 %v622, 0.25
  %v635 = vmul.f32 %v623, 0.25
  %v636 = vmul.f32 %v624, 0.25
  %v637 = vmul.f32 %v625, 0.25
  %v638 = vld [vmem:[%s6] sm:$0xff]
  %v639 = vld [vmem:[%s6 + $0x8] sm:$0xff]
  %v640 = vld [vmem:[%s6 + $0x10] sm:$0xff]
  %v641 = vld [vmem:[%s6 + $0x18] sm:$0xff]
  %v642 = vld [vmem:[%s6 + $0x20] sm:$0xff]
  %v643 = vld [vmem:[%s6 + $0x28] sm:$0xff]
  %v644 = vld [vmem:[%s6 + $0x30] sm:$0xff]
  %v645 = vld [vmem:[%s6 + $0x38] sm:$0xff]
  %v646 = vld [vmem:[%s6 + $0x40] sm:$0xff]
  %v647 = vld [vmem:[%s6 + $0x48] sm:$0xff]
  %v648 = vld [vmem:[%s6 + $0x50] sm:$0xff]
  %v649 = vld [vmem:[%s6 + $0x58] sm:$0xff]
  %vm650 = vcmask 785408
  %v652 = vsel %vm650, %v638, 0
  %v655 = vsel %vm650, %v639, 0
  %v658 = vsel %vm650, %v640, 0
  %v661 = vsel %vm650, %v641, 0
  %v664 = vsel %vm650, %v642, 0
  %v667 = vsel %vm650, %v643, 0
  %v670 = vsel %vm650, %v644, 0
  %v673 = vsel %vm650, %v645, 0
  %v676 = vsel %vm650, %v646, 0
  %v679 = vsel %vm650, %v647, 0
  %v682 = vsel %vm650, %v648, 0
  %v685 = vsel %vm650, %v649, 0
  %687 = vmatprep.subr.mxu0 0.0
  %688 = vmatpush1.msra.mxu0 0.0
  %689 = vmatprep.subr.mxu0 0.0
  %690 = vmatpush1.msra.mxu0 0.0
  %691 = vmatprep.subr.mxu0 0.0
  %692 = vmatpush1.msra.mxu0 0.0
  %693 = vmatprep.subr.mxu0 0.0
  %694 = vmatpush1.msra.mxu0 0.0
  %695 = vmatprep.subr.mxu0 0.0
  %696 = vmatpush1.msra.mxu0 %v637
  %697 = vmatprep.subr.mxu0 0.0
  %698 = vmatpush1.msra.mxu0 %v636
  %699 = vmatprep.subr.mxu0 0.0
  %700 = vmatpush1.msra.mxu0 %v635
  %701 = vmatprep.subr.mxu0 0.0
  %702 = vmatpush1.msra.mxu0 %v634
  %703 = vmatprep.subr.mxu0 0.0
  %704 = vmatpush1.msra.mxu0 %v633
  %705 = vmatprep.subr.mxu0 0.0
  %706 = vmatpush1.msra.mxu0 %v632
  %707 = vmatprep.subr.mxu0 0.0
  %708 = vmatpush1.msra.mxu0 %v631
  %709 = vmatprep.subr.mxu0 0.0
  %710 = vmatpush1.msra.mxu0 %v630
  %711 = vmatprep.subr.mxu0 0.0
  %712 = vmatpush1.msra.mxu0 %v629
  %713 = vmatprep.subr.mxu0 0.0
  %714 = vmatpush1.msra.mxu0 %v628
  %715 = vmatprep.subr.mxu0 0.0
  %716 = vmatpush1.msra.mxu0 %v627
  %717 = vmatprep.subr.mxu0 0.0
  %718 = vmatpush1.msra.mxu0 %v626
  %719 = vmatprep.subr.mxu0 0.0
  %720 = vmatpush2.msra.mxu0 0.0
  %721 = vmatprep.subr.mxu0 0.0
  %722 = vmatpush2.msra.mxu0 0.0
  %723 = vmatprep.subr.mxu0 0.0
  %724 = vmatpush2.msra.mxu0 0.0
  %725 = vmatprep.subr.mxu0 0.0
  %726 = vmatpush2.msra.mxu0 0.0
  %727 = vmatprep.subr.mxu0 0.0
  %728 = vmatpush2.msra.mxu0 0.0
  %729 = vmatprep.subr.mxu0 0.0
  %730 = vmatpush2.msra.mxu0 0.0
  %731 = vmatprep.subr.mxu0 0.0
  %732 = vmatpush2.msra.mxu0 0.0
  %733 = vmatprep.subr.mxu0 0.0
  %734 = vmatpush2.msra.mxu0 0.0
  %735 = vmatprep.subr.mxu0 0.0
  %736 = vmatpush2.msra.mxu0 0.0
  %737 = vmatprep.subr.mxu0 0.0
  %738 = vmatpush2.msra.mxu0 0.0
  %739 = vmatprep.subr.mxu0 0.0
  %740 = vmatpush2.msra.mxu0 0.0
  %741 = vmatprep.subr.mxu0 0.0
  %742 = vmatpush2.msra.mxu0 0.0
  %743 = vmatprep.subr.mxu0 0.0
  %744 = vmatpush2.msra.mxu0 0.0
  %745 = vmatprep.subr.mxu0 0.0
  %746 = vmatpush2.msra.mxu0 0.0
  %747 = vmatprep.subr.mxu0 0.0
  %748 = vmatpush2.msra.mxu0 0.0
  %749 = vmatprep.subr.mxu0 0.0
  %750 = vmatpush2.msra.mxu0 0.0
  %751 = vmatprep.mubr.f32.mxu0 0.0
  %752 = vmatmul.mubr.f32.gmra.mxu0 %v652
  %v753 = vpop.f32.mrf.mxu0
  %v754 = vadd.f32 0.0, %v753
  %v755 = vpop.f32.mrf.mxu0
  %756 = vmatprep.mubr.f32.mxu0 0.0
  %757 = vmatmul.mubr.f32.gmra.mxu0 %v655
  %v758 = vpop.f32.mrf.mxu0
  %v759 = vadd.f32 0.0, %v758
  %v760 = vpop.f32.mrf.mxu0
  %761 = vmatprep.mubr.f32.mxu0 0.0
  %762 = vmatmul.mubr.f32.gmra.mxu0 %v658
  %v763 = vpop.f32.mrf.mxu0
  %v764 = vadd.f32 0.0, %v763
  %v765 = vpop.f32.mrf.mxu0
  %766 = vmatprep.mubr.f32.mxu0 0.0
  %767 = vmatmul.mubr.f32.gmra.mxu0 %v661
  %v768 = vpop.f32.mrf.mxu0
  %v769 = vadd.f32 0.0, %v768
  %v770 = vpop.f32.mrf.mxu0
  %771 = vmatprep.mubr.f32.mxu0 0.0
  %772 = vmatmul.mubr.f32.gmra.mxu0 %v664
  %v773 = vpop.f32.mrf.mxu0
  %v774 = vadd.f32 0.0, %v773
  %v775 = vpop.f32.mrf.mxu0
  %776 = vmatprep.mubr.f32.mxu0 0.0
  %777 = vmatmul.mubr.f32.gmra.mxu0 %v667
  %v778 = vpop.f32.mrf.mxu0
  %v779 = vadd.f32 0.0, %v778
  %v780 = vpop.f32.mrf.mxu0
  %781 = vmatprep.mubr.f32.mxu0 0.0
  %782 = vmatmul.mubr.f32.gmra.mxu0 %v670
  %v783 = vpop.f32.mrf.mxu0
  %v784 = vadd.f32 0.0, %v783
  %v785 = vpop.f32.mrf.mxu0
  %786 = vmatprep.mubr.f32.mxu0 0.0
  %787 = vmatmul.mubr.f32.gmra.mxu0 %v673
  %v788 = vpop.f32.mrf.mxu0
  %v789 = vadd.f32 0.0, %v788
  %v790 = vpop.f32.mrf.mxu0
  %791 = vmatprep.mubr.f32.mxu0 0.0
  %792 = vmatmul.mubr.f32.gmra.mxu0 %v676
  %v793 = vpop.f32.mrf.mxu0
  %v794 = vadd.f32 0.0, %v793
  %v795 = vpop.f32.mrf.mxu0
  %796 = vmatprep.mubr.f32.mxu0 0.0
  %797 = vmatmul.mubr.f32.gmra.mxu0 %v679
  %v798 = vpop.f32.mrf.mxu0
  %v799 = vadd.f32 0.0, %v798
  %v800 = vpop.f32.mrf.mxu0
  %801 = vmatprep.mubr.f32.mxu0 0.0
  %802 = vmatmul.mubr.f32.gmra.mxu0 %v682
  %v803 = vpop.f32.mrf.mxu0
  %v804 = vadd.f32 0.0, %v803
  %v805 = vpop.f32.mrf.mxu0
  %806 = vmatprep.mubr.f32.mxu0 0.0
  %807 = vmatmul.mubr.f32.gmra.mxu0 %v685
  %v808 = vpop.f32.mrf.mxu0
  %v809 = vadd.f32 0.0, %v808
  %v810 = vpop.f32.mrf.mxu0
  %811 = vdwg.mxu0
  %v812 = vld [vmem:[%s7] sm:$0xff]
  %v813 = vld [vmem:[%s7 + $0x8] sm:$0xff]
  %v814 = vld [vmem:[%s7 + $0x10] sm:$0xff]
  %v815 = vld [vmem:[%s7 + $0x18] sm:$0xff]
  %v816 = vld [vmem:[%s7 + $0x20] sm:$0xff]
  %v817 = vld [vmem:[%s7 + $0x28] sm:$0xff]
  %v818 = vld [vmem:[%s7 + $0x30] sm:$0xff]
  %v819 = vld [vmem:[%s7 + $0x38] sm:$0xff]
  %v820 = vld [vmem:[%s7 + $0x40] sm:$0xff]
  %v821 = vld [vmem:[%s7 + $0x48] sm:$0xff]
  %v822 = vld [vmem:[%s7 + $0x50] sm:$0xff]
  %v823 = vld [vmem:[%s7 + $0x58] sm:$0xff]
  %v824 = vld [vmem:[%s8] sm:$0xff]
  %v825 = vld [vmem:[%s8 + $0x8] sm:$0xff]
  %v826 = vld [vmem:[%s8 + $0x10] sm:$0xff]
  %v827 = vld [vmem:[%s8 + $0x18] sm:$0xff]
  %v828 = vld [vmem:[%s8 + $0x20] sm:$0xff]
  %v829 = vld [vmem:[%s8 + $0x28] sm:$0xff]
  %v830 = vld [vmem:[%s8 + $0x30] sm:$0xff]
  %v831 = vld [vmem:[%s8 + $0x38] sm:$0xff]
  %v832 = vld [vmem:[%s8 + $0x40] sm:$0xff]
  %v833 = vld [vmem:[%s8 + $0x48] sm:$0xff]
  %v834 = vld [vmem:[%s8 + $0x50] sm:$0xff]
  %v835 = vld [vmem:[%s8 + $0x58] sm:$0xff]
  %836 = vadd.xlane.f32.xlu0 %v754
  %v837 = vpop.xlane.xlu0 %836
  %838 = vadd.xlane.f32.xlu0 %v759
  %v839 = vpop.xlane.xlu0 %838
  %840 = vadd.xlane.f32.xlu0 %v764
  %v841 = vpop.xlane.xlu0 %840
  %842 = vadd.xlane.f32.xlu0 %v769
  %v843 = vpop.xlane.xlu0 %842
  %844 = vadd.xlane.f32.xlu0 %v774
  %v845 = vpop.xlane.xlu0 %844
  %846 = vadd.xlane.f32.xlu0 %v779
  %v847 = vpop.xlane.xlu0 %846
  %848 = vadd.xlane.f32.xlu0 %v784
  %v849 = vpop.xlane.xlu0 %848
  %850 = vadd.xlane.f32.xlu0 %v789
  %v851 = vpop.xlane.xlu0 %850
  %852 = vadd.xlane.f32.xlu0 %v794
  %v853 = vpop.xlane.xlu0 %852
  %854 = vadd.xlane.f32.xlu0 %v799
  %v855 = vpop.xlane.xlu0 %854
  %856 = vadd.xlane.f32.xlu0 %v804
  %v857 = vpop.xlane.xlu0 %856
  %858 = vadd.xlane.f32.xlu0 %v809
  %v859 = vpop.xlane.xlu0 %858
  %v860 = vmul.f32 %v837, 0.0078125
  %v861 = vmul.f32 %v839, 0.0078125
  %v862 = vmul.f32 %v841, 0.0078125
  %v863 = vmul.f32 %v843, 0.0078125
  %v864 = vmul.f32 %v845, 0.0078125
  %v865 = vmul.f32 %v847, 0.0078125
  %v866 = vmul.f32 %v849, 0.0078125
  %v867 = vmul.f32 %v851, 0.0078125
  %v868 = vmul.f32 %v853, 0.0078125
  %v869 = vmul.f32 %v855, 0.0078125
  %v870 = vmul.f32 %v857, 0.0078125
  %v871 = vmul.f32 %v859, 0.0078125
  %v872 = vmul.f32 %v754, %v754
  %v873 = vmul.f32 %v759, %v759
  %v874 = vmul.f32 %v764, %v764
  %v875 = vmul.f32 %v769, %v769
  %v876 = vmul.f32 %v774, %v774
  %v877 = vmul.f32 %v779, %v779
  %v878 = vmul.f32 %v784, %v784
  %v879 = vmul.f32 %v789, %v789
  %v880 = vmul.f32 %v794, %v794
  %v881 = vmul.f32 %v799, %v799
  %v882 = vmul.f32 %v804, %v804
  %v883 = vmul.f32 %v809, %v809
  %884 = vadd.xlane.f32.xlu0 %v872
  %v885 = vpop.xlane.xlu0 %884
  %886 = vadd.xlane.f32.xlu0 %v873
  %v887 = vpop.xlane.xlu0 %886
  %888 = vadd.xlane.f32.xlu0 %v874
  %v889 = vpop.xlane.xlu0 %888
  %890 = vadd.xlane.f32.xlu0 %v875
  %v891 = vpop.xlane.xlu0 %890
  %892 = vadd.xlane.f32.xlu0 %v876
  %v893 = vpop.xlane.xlu0 %892
  %894 = vadd.xlane.f32.xlu0 %v877
  %v895 = vpop.xlane.xlu0 %894
  %896 = vadd.xlane.f32.xlu0 %v878
  %v897 = vpop.xlane.xlu0 %896
  %898 = vadd.xlane.f32.xlu0 %v879
  %v899 = vpop.xlane.xlu0 %898
  %900 = vadd.xlane.f32.xlu0 %v880
  %v901 = vpop.xlane.xlu0 %900
  %902 = vadd.xlane.f32.xlu0 %v881
  %v903 = vpop.xlane.xlu0 %902
  %904 = vadd.xlane.f32.xlu0 %v882
  %v905 = vpop.xlane.xlu0 %904
  %906 = vadd.xlane.f32.xlu0 %v883
  %v907 = vpop.xlane.xlu0 %906
  %v908 = vmul.f32 %v885, 0.0078125
  %v909 = vmul.f32 %v887, 0.0078125
  %v910 = vmul.f32 %v889, 0.0078125
  %v911 = vmul.f32 %v891, 0.0078125
  %v912 = vmul.f32 %v893, 0.0078125
  %v913 = vmul.f32 %v895, 0.0078125
  %v914 = vmul.f32 %v897, 0.0078125
  %v915 = vmul.f32 %v899, 0.0078125
  %v916 = vmul.f32 %v901, 0.0078125
  %v917 = vmul.f32 %v903, 0.0078125
  %v918 = vmul.f32 %v905, 0.0078125
  %v919 = vmul.f32 %v907, 0.0078125
  %v920 = vmul.f32 %v860, %v860
  %v921 = vmul.f32 %v861, %v861
  %v922 = vmul.f32 %v862, %v862
  %v923 = vmul.f32 %v863, %v863
  %v924 = vmul.f32 %v864, %v864
  %v925 = vmul.f32 %v865, %v865
  %v926 = vmul.f32 %v866, %v866
  %v927 = vmul.f32 %v867, %v867
  %v928 = vmul.f32 %v868, %v868
  %v929 = vmul.f32 %v869, %v869
  %v930 = vmul.f32 %v870, %v870
  %v931 = vmul.f32 %v871, %v871
  %v932 = vsub.f32 %v908, %v920
  %v933 = vsub.f32 %v909, %v921
  %v934 = vsub.f32 %v910, %v922
  %v935 = vsub.f32 %v911, %v923
  %v936 = vsub.f32 %v912, %v924
  %v937 = vsub.f32 %v913, %v925
  %v938 = vsub.f32 %v914, %v926
  %v939 = vsub.f32 %v915, %v927
  %v940 = vsub.f32 %v916, %v928
  %v941 = vsub.f32 %v917, %v929
  %v942 = vsub.f32 %v918, %v930
  %v943 = vsub.f32 %v919, %v931
  %v944 = vsub.f32 %v754, %v860
  %v945 = vsub.f32 %v759, %v861
  %v946 = vsub.f32 %v764, %v862
  %v947 = vsub.f32 %v769, %v863
  %v948 = vsub.f32 %v774, %v864
  %v949 = vsub.f32 %v779, %v865
  %v950 = vsub.f32 %v784, %v866
  %v951 = vsub.f32 %v789, %v867
  %v952 = vsub.f32 %v794, %v868
  %v953 = vsub.f32 %v799, %v869
  %v954 = vsub.f32 %v804, %v870
  %v955 = vsub.f32 %v809, %v871
  %v956 = vadd.f32 %v932, 1e-05
  %v957 = vadd.f32 %v933, 1e-05
  %v958 = vadd.f32 %v934, 1e-05
  %v959 = vadd.f32 %v935, 1e-05
  %v960 = vadd.f32 %v936, 1e-05
  %v961 = vadd.f32 %v937, 1e-05
  %v962 = vadd.f32 %v938, 1e-05
  %v963 = vadd.f32 %v939, 1e-05
  %v964 = vadd.f32 %v940, 1e-05
  %v965 = vadd.f32 %v941, 1e-05
  %v966 = vadd.f32 %v942, 1e-05
  %v967 = vadd.f32 %v943, 1e-05
  %v968 = vrsqrt.pop %v956
  %v969 = vrsqrt.pop %v957
  %v970 = vrsqrt.pop %v958
  %v971 = vrsqrt.pop %v959
  %v972 = vrsqrt.pop %v960
  %v973 = vrsqrt.pop %v961
  %v974 = vrsqrt.pop %v962
  %v975 = vrsqrt.pop %v963
  %v976 = vrsqrt.pop %v964
  %v977 = vrsqrt.pop %v965
  %v978 = vrsqrt.pop %v966
  %v979 = vrsqrt.pop %v967
  %v980 = vmul.f32 %v944, %v968
  %v981 = vmul.f32 %v945, %v969
  %v982 = vmul.f32 %v946, %v970
  %v983 = vmul.f32 %v947, %v971
  %v984 = vmul.f32 %v948, %v972
  %v985 = vmul.f32 %v949, %v973
  %v986 = vmul.f32 %v950, %v974
  %v987 = vmul.f32 %v951, %v975
  %v988 = vmul.f32 %v952, %v976
  %v989 = vmul.f32 %v953, %v977
  %v990 = vmul.f32 %v954, %v978
  %v991 = vmul.f32 %v955, %v979
  %993 = vset.pattern.permute.xlu0 0
  %994 = vperm.xlu0 %993, %v812
  %v995 = vpop.permute.xlu0 %994
  %998 = vset.pattern.permute.xlu0 0
  %999 = vperm.xlu0 %998, %v813
  %v1000 = vpop.permute.xlu0 %999
  %1003 = vset.pattern.permute.xlu0 0
  %1004 = vperm.xlu0 %1003, %v814
  %v1005 = vpop.permute.xlu0 %1004
  %1008 = vset.pattern.permute.xlu0 0
  %1009 = vperm.xlu0 %1008, %v815
  %v1010 = vpop.permute.xlu0 %1009
  %1013 = vset.pattern.permute.xlu0 0
  %1014 = vperm.xlu0 %1013, %v816
  %v1015 = vpop.permute.xlu0 %1014
  %1018 = vset.pattern.permute.xlu0 0
  %1019 = vperm.xlu0 %1018, %v817
  %v1020 = vpop.permute.xlu0 %1019
  %1023 = vset.pattern.permute.xlu0 0
  %1024 = vperm.xlu0 %1023, %v818
  %v1025 = vpop.permute.xlu0 %1024
  %1028 = vset.pattern.permute.xlu0 0
  %1029 = vperm.xlu0 %1028, %v819
  %v1030 = vpop.permute.xlu0 %1029
  %1033 = vset.pattern.permute.xlu0 0
  %1034 = vperm.xlu0 %1033, %v820
  %v1035 = vpop.permute.xlu0 %1034
  %1038 = vset.pattern.permute.xlu0 0
  %1039 = vperm.xlu0 %1038, %v821
  %v1040 = vpop.permute.xlu0 %1039
  %1043 = vset.pattern.permute.xlu0 0
  %1044 = vperm.xlu0 %1043, %v822
  %v1045 = vpop.permute.xlu0 %1044
  %1048 = vset.pattern.permute.xlu0 0
  %1049 = vperm.xlu0 %1048, %v823
  %v1050 = vpop.permute.xlu0 %1049
  %v1052 = vmul.f32 %v980, %v995
  %v1053 = vmul.f32 %v981, %v1000
  %v1054 = vmul.f32 %v982, %v1005
  %v1055 = vmul.f32 %v983, %v1010
  %v1056 = vmul.f32 %v984, %v1015
  %v1057 = vmul.f32 %v985, %v1020
  %v1058 = vmul.f32 %v986, %v1025
  %v1059 = vmul.f32 %v987, %v1030
  %v1060 = vmul.f32 %v988, %v1035
  %v1061 = vmul.f32 %v989, %v1040
  %v1062 = vmul.f32 %v990, %v1045
  %v1063 = vmul.f32 %v991, %v1050
  %1065 = vset.pattern.permute.xlu0 0
  %1066 = vperm.xlu0 %1065, %v824
  %v1067 = vpop.permute.xlu0 %1066
  %1070 = vset.pattern.permute.xlu0 0
  %1071 = vperm.xlu0 %1070, %v825
  %v1072 = vpop.permute.xlu0 %1071
  %1075 = vset.pattern.permute.xlu0 0
  %1076 = vperm.xlu0 %1075, %v826
  %v1077 = vpop.permute.xlu0 %1076
  %1080 = vset.pattern.permute.xlu0 0
  %1081 = vperm.xlu0 %1080, %v827
  %v1082 = vpop.permute.xlu0 %1081
  %1085 = vset.pattern.permute.xlu0 0
  %1086 = vperm.xlu0 %1085, %v828
  %v1087 = vpop.permute.xlu0 %1086
  %1090 = vset.pattern.permute.xlu0 0
  %1091 = vperm.xlu0 %1090, %v829
  %v1092 = vpop.permute.xlu0 %1091
  %1095 = vset.pattern.permute.xlu0 0
  %1096 = vperm.xlu0 %1095, %v830
  %v1097 = vpop.permute.xlu0 %1096
  %1100 = vset.pattern.permute.xlu0 0
  %1101 = vperm.xlu0 %1100, %v831
  %v1102 = vpop.permute.xlu0 %1101
  %1105 = vset.pattern.permute.xlu0 0
  %1106 = vperm.xlu0 %1105, %v832
  %v1107 = vpop.permute.xlu0 %1106
  %1110 = vset.pattern.permute.xlu0 0
  %1111 = vperm.xlu0 %1110, %v833
  %v1112 = vpop.permute.xlu0 %1111
  %1115 = vset.pattern.permute.xlu0 0
  %1116 = vperm.xlu0 %1115, %v834
  %v1117 = vpop.permute.xlu0 %1116
  %1120 = vset.pattern.permute.xlu0 0
  %1121 = vperm.xlu0 %1120, %v835
  %v1122 = vpop.permute.xlu0 %1121
  %v1124 = vadd.f32 %v1052, %v1067
  %v1125 = vadd.f32 %v1053, %v1072
  %v1126 = vadd.f32 %v1054, %v1077
  %v1127 = vadd.f32 %v1055, %v1082
  %v1128 = vadd.f32 %v1056, %v1087
  %v1129 = vadd.f32 %v1057, %v1092
  %v1130 = vadd.f32 %v1058, %v1097
  %v1131 = vadd.f32 %v1059, %v1102
  %v1132 = vadd.f32 %v1060, %v1107
  %v1133 = vadd.f32 %v1061, %v1112
  %v1134 = vadd.f32 %v1062, %v1117
  %v1135 = vadd.f32 %v1063, %v1122
  %v1136 = vmax.f32 %v1124, 0.0
  %v1137 = vmax.f32 %v1125, 0.0
  %v1138 = vmax.f32 %v1126, 0.0
  %v1139 = vmax.f32 %v1127, 0.0
  %v1140 = vmax.f32 %v1128, 0.0
  %v1141 = vmax.f32 %v1129, 0.0
  %v1142 = vmax.f32 %v1130, 0.0
  %v1143 = vmax.f32 %v1131, 0.0
  %v1144 = vmax.f32 %v1132, 0.0
  %v1145 = vmax.f32 %v1133, 0.0
  %v1146 = vmax.f32 %v1134, 0.0
  %v1147 = vmax.f32 %v1135, 0.0
  %v1148 = vld [vmem:[%s9] sm:$0xff]
  %v1149 = vld [vmem:[%s9 + $0x8] sm:$0xff]
  %v1150 = vld [vmem:[%s9 + $0x10] sm:$0x3]
  %v1151 = vld [vmem:[%s10] sm:$0xff]
  %v1152 = vld [vmem:[%s10 + $0x8] sm:$0xff]
  %v1153 = vld [vmem:[%s10 + $0x10] sm:$0x3]
  %1155 = vset.pattern.permute.xlu0 0
  %1156 = vperm.xlu0 %1155, %v1151
  %v1157 = vpop.permute.xlu0 %1156
  %1160 = vset.pattern.permute.xlu0 0
  %1161 = vperm.xlu0 %1160, %v1152
  %v1162 = vpop.permute.xlu0 %1161
  %1165 = vset.pattern.permute.xlu0 0
  %1166 = vperm.xlu0 %1165, %v1153
  %v1167 = vpop.permute.xlu0 %1166
  %v1170 = vsel %vm650, %v1148, 0
  %v1173 = vsel %vm650, %v1149, 0
  %v1176 = vsel %vm650, %v1150, 0
  %1178 = vmatprep.subr.mxu0 0.0
  %1179 = vmatpush1.msra.mxu0 0.0
  %1180 = vmatprep.subr.mxu0 0.0
  %1181 = vmatpush1.msra.mxu0 0.0
  %1182 = vmatprep.subr.mxu0 0.0
  %1183 = vmatpush1.msra.mxu0 0.0
  %1184 = vmatprep.subr.mxu0 0.0
  %1185 = vmatpush1.msra.mxu0 0.0
  %1186 = vmatprep.subr.mxu0 0.0
  %1187 = vmatpush1.msra.mxu0 %v1147
  %1188 = vmatprep.subr.mxu0 0.0
  %1189 = vmatpush1.msra.mxu0 %v1146
  %1190 = vmatprep.subr.mxu0 0.0
  %1191 = vmatpush1.msra.mxu0 %v1145
  %1192 = vmatprep.subr.mxu0 0.0
  %1193 = vmatpush1.msra.mxu0 %v1144
  %1194 = vmatprep.subr.mxu0 0.0
  %1195 = vmatpush1.msra.mxu0 %v1143
  %1196 = vmatprep.subr.mxu0 0.0
  %1197 = vmatpush1.msra.mxu0 %v1142
  %1198 = vmatprep.subr.mxu0 0.0
  %1199 = vmatpush1.msra.mxu0 %v1141
  %1200 = vmatprep.subr.mxu0 0.0
  %1201 = vmatpush1.msra.mxu0 %v1140
  %1202 = vmatprep.subr.mxu0 0.0
  %1203 = vmatpush1.msra.mxu0 %v1139
  %1204 = vmatprep.subr.mxu0 0.0
  %1205 = vmatpush1.msra.mxu0 %v1138
  %1206 = vmatprep.subr.mxu0 0.0
  %1207 = vmatpush1.msra.mxu0 %v1137
  %1208 = vmatprep.subr.mxu0 0.0
  %1209 = vmatpush1.msra.mxu0 %v1136
  %1210 = vmatprep.subr.mxu0 0.0
  %1211 = vmatpush2.msra.mxu0 0.0
  %1212 = vmatprep.subr.mxu0 0.0
  %1213 = vmatpush2.msra.mxu0 0.0
  %1214 = vmatprep.subr.mxu0 0.0
  %1215 = vmatpush2.msra.mxu0 0.0
  %1216 = vmatprep.subr.mxu0 0.0
  %1217 = vmatpush2.msra.mxu0 0.0
  %1218 = vmatprep.subr.mxu0 0.0
  %1219 = vmatpush2.msra.mxu0 0.0
  %1220 = vmatprep.subr.mxu0 0.0
  %1221 = vmatpush2.msra.mxu0 0.0
  %1222 = vmatprep.subr.mxu0 0.0
  %1223 = vmatpush2.msra.mxu0 0.0
  %1224 = vmatprep.subr.mxu0 0.0
  %1225 = vmatpush2.msra.mxu0 0.0
  %1226 = vmatprep.subr.mxu0 0.0
  %1227 = vmatpush2.msra.mxu0 0.0
  %1228 = vmatprep.subr.mxu0 0.0
  %1229 = vmatpush2.msra.mxu0 0.0
  %1230 = vmatprep.subr.mxu0 0.0
  %1231 = vmatpush2.msra.mxu0 0.0
  %1232 = vmatprep.subr.mxu0 0.0
  %1233 = vmatpush2.msra.mxu0 0.0
  %1234 = vmatprep.subr.mxu0 0.0
  %1235 = vmatpush2.msra.mxu0 0.0
  %1236 = vmatprep.subr.mxu0 0.0
  %1237 = vmatpush2.msra.mxu0 0.0
  %1238 = vmatprep.subr.mxu0 0.0
  %1239 = vmatpush2.msra.mxu0 0.0
  %1240 = vmatprep.subr.mxu0 0.0
  %1241 = vmatpush2.msra.mxu0 0.0
  %1242 = vmatprep.mubr.f32.mxu0 0.0
  %1243 = vmatmul.mubr.f32.gmra.mxu0 %v1170
  %v1244 = vpop.f32.mrf.mxu0
  %v1245 = vadd.f32 %v1157, %v1244
  %v1246 = vpop.f32.mrf.mxu0
  %1247 = vmatprep.mubr.f32.mxu0 0.0
  %1248 = vmatmul.mubr.f32.gmra.mxu0 %v1173
  %v1249 = vpop.f32.mrf.mxu0
  %v1250 = vadd.f32 %v1162, %v1249
  %v1251 = vpop.f32.mrf.mxu0
  %1252 = vmatprep.mubr.f32.mxu0 0.0
  %1253 = vmatmul.mubr.f32.gmra.mxu0 %v1176
  %v1254 = vpop.f32.mrf.mxu0
  %v1255 = vadd.f32 %v1167, %v1254
  %v1256 = vpop.f32.mrf.mxu0
  %1257 = vdwg.mxu0
  %1258 = vst [vmem:[%s11] sm:$0xff] %v1245
  %1259 = vst [vmem:[%s11 + $0x8] sm:$0xff] %v1250
  %1260 = vst [vmem:[%s11 + $0x10] sm:$0x3] %v1255
  // Predicated region
  $region46: #{generator_forward.1} parent=0 // pred_check
    _
  $region47: #{generator_forward.1} parent=0 // pred_check_branch
    %1262 = sbr.rel (0) target = $region49
  $region48: #{generator_forward.1} parent=0 // pred_region
    _
  $region49: #{generator_forward.1} parent=0 // pred_fallthru
    _
  // Predicated region
  $region50: #{generator_forward.1} parent=0 // pred_check
    _
  $region51: #{generator_forward.1} parent=0 // pred_check_branch
    %1264 = sbr.rel (0) target = $region53
  $region52: #{generator_forward.1} parent=0 // pred_region
    _
  $region53: #{generator_forward.1} parent=0 // pred_fallthru
    _

</llo_original>
